<compile_context>
chip_gen: v5e
topology: v5e:2x2
jax: 0.10.0
libtpu: 0.0.40
codegen_flags: <defaults>
</compile_context>

<pallas_src>
import jax
import jax.numpy as jnp
from jax.experimental import pallas as pl
from jax.experimental.pallas import tpu as pltpu

_MAX_BLOCK_BYTES = 4 << 20        # ~4 MiB per x block (per perf review, v7x)
_MAX_TILE_R = 2048                # bounds (tile_r, 1)->(tile_r, 128) param padding
_VMEM_LIMIT_BYTES = 32 * 1024 * 1024   # safe on v5e/v6e/v7x; >= our ~20 MiB peak


def _frozen_bn_kernel(x_ref, scale_ref, bias_ref, o_ref):
    # Elementwise VPU work on a lane-dense (tile_r, tile_c) block; scale/bias
    # broadcast from (tile_r, 1) or (1, tile_c).
    x = x_ref[...].astype(jnp.float32)
    o_ref[...] = (x * scale_ref[...] + bias_ref[...]).astype(o_ref.dtype)


def _pick_tiles(rows, cols, itemsize, lane_param_bytes=0, max_tile_r=None):
    """Pick (tile_r, tile_c) for a (rows, cols) lane-dense map.

    lane_param_bytes: extra VMEM bytes each lane column costs for the
    (1, tile_c) f32 parameter blocks (2 params x 8 sublanes x 4 B) so the
    budget accounts for their padding; 0 when params are per-row.
    """
    sub = {1: 32, 2: 16, 4: 8}.get(itemsize, 8)   # packed sublane granularity
    budget = _MAX_BLOCK_BYTES
    per_lane_min = sub * itemsize + lane_param_bytes

    # Lane (last) dim: full extent whenever one sublane-group of rows fits the
    # budget -> contiguous DMA runs, unmasked stores, no trailing stripe.
    if cols <= 128 or cols * per_lane_min <= budget:
        tile_c = cols
    else:
        # Fewest 128-multiple stripes that fit, sized to (nearly) divide cols
        # so the trailing stripe is almost full instead of ~half empty.
        max_c = max(128, (budget // per_lane_min) // 128 * 128)
        n_c = pl.cdiv(cols, max_c)
        tile_c = min(((pl.cdiv(cols, n_c) + 127) // 128) * 128, cols)

    # Row (sublane) dim under the remaining budget.
    rem = max(budget - tile_c * lane_param_bytes, tile_c * itemsize * sub)
    max_r = max(sub, (rem // (tile_c * itemsize)) // sub * sub)
    if max_tile_r is not None:
        max_r = max(sub, min(max_r, max_tile_r) // sub * sub)
    tile_r = rows if rows <= max_r else max_r     # full dim is always legal
    return tile_r, tile_c


def frozen_batch_norm_2d(x, weight, bias, running_mean, running_var,
                         *, eps=1e-5, donate_x=False):
    """x: (N, C, H, W); params: (C,). Matches torch FrozenBatchNorm2d.forward."""
    N, C, H, W = x.shape
    hw = H * W
    f32 = jnp.float32

    # Fold frozen statistics into one scale/bias per channel (f32).
    scale_c = weight.astype(f32) * jax.lax.rsqrt(running_var.astype(f32) + eps)
    bias_c = bias.astype(f32) - running_mean.astype(f32) * scale_c

    if hw >= 128:
        # Lane-dense (N*C, H*W) view; params vary along rows. Row r of this
        # contiguous NCHW view has channel r % C, matching jnp.tile order.
        rows, cols = N * C, hw
        x2 = x.reshape(rows, cols)
        scale2 = jnp.tile(scale_c, N).reshape(rows, 1)
        bias2 = jnp.tile(bias_c, N).reshape(rows, 1)
        tile_r, tile_c = _pick_tiles(rows, cols, x.dtype.itemsize,
                                     max_tile_r=_MAX_TILE_R)
        p_block = (tile_r, 1)
        p_index = lambda i, j: (i, 0)   # constant across inner (j) axis: no re-DMA
    else:
        # Small H*W: merge C into the lane axis so output stays lane-dense.
        # Params become a (1, C*H*W) per-lane pattern (each channel repeated
        # H*W times, matching the contiguous (C, H*W) flattening).
        rows, cols = N, C * hw
        x2 = x.reshape(rows, cols)
        scale2 = jnp.repeat(scale_c, hw).reshape(1, cols)
        bias2 = jnp.repeat(bias_c, hw).reshape(1, cols)
        tile_r, tile_c = _pick_tiles(rows, cols, x.dtype.itemsize,
                                     lane_param_bytes=2 * 8 * 4)
        p_block = (1, tile_c)
        p_index = lambda i, j: (0, j)

    grid = (pl.cdiv(rows, tile_r), pl.cdiv(cols, tile_c))
    x_spec = pl.BlockSpec((tile_r, tile_c), lambda i, j: (i, j))
    p_spec = pl.BlockSpec(p_block, p_index)

    out2 = pl.pallas_call(
        _frozen_bn_kernel,
        out_shape=jax.ShapeDtypeStruct((rows, cols), x.dtype),
        grid_spec=pltpu.PrefetchScalarGridSpec(
            num_scalar_prefetch=0,
            grid=grid,
            in_specs=[x_spec, p_spec, p_spec],
            out_specs=x_spec,
        ),
        compiler_params=pltpu.CompilerParams(
            dimension_semantics=("parallel", "parallel"),
            vmem_limit_bytes=_VMEM_LIMIT_BYTES,
        ),
        cost_estimate=pl.CostEstimate(
            flops=2 * x.size,
            transcendentals=0,
            bytes_accessed=2 * x.size * x.dtype.itemsize
                           + (scale2.size + bias2.size) * 4,
        ),
        # Opt-in: callers that no longer need the activation can donate it so
        # the output reuses x's HBM buffer (halves peak footprint).
        input_output_aliases={0: 0} if donate_x else {},
    )(x2, scale2, bias2)
    return out2.reshape(N, C, H, W)


def _reference(x, weight, bias, running_mean, running_var, eps=1e-5):
    w = weight.reshape(1, -1, 1, 1)
    b = bias.reshape(1, -1, 1, 1)
    rv = running_var.reshape(1, -1, 1, 1)
    rm = running_mean.reshape(1, -1, 1, 1)
    scale = w * jax.lax.rsqrt(rv + eps)
    bb = b - rm * scale
    return x * scale + bb


if __name__ == "__main__":
    key = jax.random.PRNGKey(0)

    def make_inputs(k, N, C, H, W):
        kx, kw, kb, km, kv = jax.random.split(k, 5)
        x = jax.random.normal(kx, (N, C, H, W), dtype=jnp.float32)
        weight = 1.0 + 0.1 * jax.random.normal(kw, (C,), dtype=jnp.float32)
        bias = 0.1 * jax.random.normal(kb, (C,), dtype=jnp.float32)
        running_mean = 0.1 * jax.random.normal(km, (C,), dtype=jnp.float32)
        running_var = 1.0 + 0.1 * jax.random.uniform(kv, (C,), dtype=jnp.float32)
        return x, weight, bias, running_mean, running_var

    k1, k2 = jax.random.split(key)

    # Main path: H*W = 256 >= 128 lanes  ->  (N*C, H*W) view.
    args = make_inputs(k1, 2, 4, 16, 16)
    out = jax.block_until_ready(frozen_batch_norm_2d(*args))
    ref = _reference(*args)
    assert out.shape == (2, 4, 16, 16) and out.dtype == jnp.float32
    assert jnp.allclose(out, ref, atol=1e-5, rtol=1e-5)

    # Small-spatial path: H*W = 49 < 128 lanes  ->  (N, C*H*W) view.
    args2 = make_inputs(k2, 2, 4, 7, 7)
    out2 = jax.block_until_ready(frozen_batch_norm_2d(*args2))
    ref2 = _reference(*args2)
    assert out2.shape == (2, 4, 7, 7) and out2.dtype == jnp.float32
    assert jnp.allclose(out2, ref2, atol=1e-5, rtol=1e-5)

    print("KERNEL_OK")
</pallas_src>

<mosaic_0001>
module attributes {stable_mosaic.version = 11 : i64} {
  func.func @_frozen_bn_kernel(%arg0: i32, %arg1: i32, %arg2: memref<8x256xf32, #tpu.memory_space<vmem>>, %arg3: memref<8x1xf32, #tpu.memory_space<vmem>>, %arg4: memref<8x1xf32, #tpu.memory_space<vmem>>, %arg5: memref<8x256xf32, #tpu.memory_space<vmem>>) attributes {dimension_semantics = [#tpu.dimension_semantics<parallel>, #tpu.dimension_semantics<parallel>], iteration_bounds = array<i64: 1, 1>, scalar_prefetch = 0 : i64, scratch_operands = 0 : i64, tpu.core_type = #tpu.core_type<tc>, window_params = [{transform_indices = @transform_0, window_bounds = array<i64: 8, 256>}, {transform_indices = @transform_1, window_bounds = array<i64: 8, 1>}, {transform_indices = @transform_2, window_bounds = array<i64: 8, 1>}, {transform_indices = @transform_3, window_bounds = array<i64: 8, 256>}]} {
    %c0 = arith.constant 0 : index
    %c0_0 = arith.constant 0 : index
    %0 = vector.load %arg2[%c0, %c0_0] : memref<8x256xf32, #tpu.memory_space<vmem>>, vector<8x256xf32>
    %c0_1 = arith.constant 0 : index
    %c0_2 = arith.constant 0 : index
    %1 = vector.load %arg3[%c0_1, %c0_2] : memref<8x1xf32, #tpu.memory_space<vmem>>, vector<8x1xf32>
    %2 = vector.broadcast %1 : vector<8x1xf32> to vector<8x256xf32>
    %3 = arith.mulf %0, %2 : vector<8x256xf32>
    %c0_3 = arith.constant 0 : index
    %c0_4 = arith.constant 0 : index
    %4 = vector.load %arg4[%c0_3, %c0_4] : memref<8x1xf32, #tpu.memory_space<vmem>>, vector<8x1xf32>
    %5 = vector.broadcast %4 : vector<8x1xf32> to vector<8x256xf32>
    %6 = arith.addf %3, %5 : vector<8x256xf32>
    %c0_5 = arith.constant 0 : index
    %c0_6 = arith.constant 0 : index
    %7 = vector.load %arg5[%c0_5, %c0_6] : memref<8x256xf32, #tpu.memory_space<vmem>>, vector<8x256xf32>
    tpu.vector_store %arg5[%c0_5, %c0_6], %6 {strides = array<i32>} : memref<8x256xf32, #tpu.memory_space<vmem>>, vector<8x256xf32>,
    return
  }
  func.func @transform_0(%arg0: i32, %arg1: i32) -> (i32, i32) {
    %c0_i32 = arith.constant 0 : i32
    return %arg0, %arg1 : i32, i32
  }
  func.func @transform_1(%arg0: i32, %arg1: i32) -> (i32, i32) {
    %c0_i32 = arith.constant 0 : i32
    %c0_i32_0 = arith.constant 0 : i32
    return %arg0, %c0_i32 : i32, i32
  }
  func.func @transform_2(%arg0: i32, %arg1: i32) -> (i32, i32) {
    %c0_i32 = arith.constant 0 : i32
    %c0_i32_0 = arith.constant 0 : i32
    return %arg0, %c0_i32 : i32, i32
  }
  func.func @transform_3(%arg0: i32, %arg1: i32) -> (i32, i32) {
    %c0_i32 = arith.constant 0 : i32
    return %arg0, %arg1 : i32, i32
  }
}

</mosaic_0001>

<llo_original>
// kernel: tpu_custom_call.1
$region0: #{tpu_custom_call.1}
  #allocation0 [shape = 'u32[]', space=smem, size = 0x4, offset = 0x4, fixed_abs, tag = 'smem constant byte address 0x4 - core index']
  #allocation1 [shape = 'u32[72,128]{1,0:T(1,128)}', space=vmem, size = 0x9000, scoped, tag = 'internal scratch']
  %s0 = inlined_call_operand.vmem [shape: f32[8,256], index: 0, kind: input, shape index: {}]
  %s1 = inlined_call_operand.vmem [shape: f32[8,1], index: 1, kind: input, shape index: {}]
  %s2 = inlined_call_operand.vmem [shape: f32[8,1], index: 2, kind: input, shape index: {}]
  %s3 = inlined_call_operand.hbm [shape: f32[8,256], index: 3, kind: output, shape index: {}]
  %s4 = sld [smem:[#allocation0]]
  $region22: #{tpu_custom_call.1} parent=0
    _
  %s6 = ssub.s32 1, %s4
  %s7 = scalar_select 0, %s6, %s4
  $region1: #{tpu_custom_call.1} parent=0
    #allocation2 [shape = 'u8[8192]{0}', space=vmem, size = 0x2000, scoped, tag = 'output window, operand 0, single buffered']
    #allocation3 [shape = 's32[1]{0}', space=sflag, size = 0x4, scoped, tag = 'scoped memory for tpu_custom_call.1']
    %8 = vsyncpa [#allocation3], 0
    // Predicated region
    $region2: #{tpu_custom_call.1} parent=1 // pred_check
      _
    $region3: #{tpu_custom_call.1} parent=1 // pred_check_branch
      %10 = sbr.rel (0) target = $region5
    $region4: #{tpu_custom_call.1} parent=1 // pred_region
      _
    $region5: #{tpu_custom_call.1} parent=1 // pred_fallthru
      _
    // Predicated region
    $region6: #{tpu_custom_call.1} parent=1 // pred_check
      _
    $region7: #{tpu_custom_call.1} parent=1 // pred_check_branch
      %12 = sbr.rel (0) target = $region9
    $region8: #{tpu_custom_call.1} parent=1 // pred_region
      _
    $region9: #{tpu_custom_call.1} parent=1 // pred_fallthru
      _
    // Predicated region
    $region10: #{tpu_custom_call.1} parent=1 // pred_check
      _
    $region11: #{tpu_custom_call.1} parent=1 // pred_check_branch
      %14 = sbr.rel (0) target = $region13
    $region12: #{tpu_custom_call.1} parent=1 // pred_region
      _
    $region13: #{tpu_custom_call.1} parent=1 // pred_fallthru
      _
    %v15 = vld [vmem:[%s0] sm:$0xff]
    %v16 = vld [vmem:[%s0 + $0x8] sm:$0xff]
    %v17 = vld [vmem:[%s1] sm:$0xff]
    %19 = vset.pattern.permute.xlu0 0
    %20 = vperm.xlu0 %19, %v17
    %v21 = vpop.permute.xlu0 %20
    %v23 = vmul.f32 %v15, %v21
    %v24 = vmul.f32 %v16, %v21
    %v25 = vld [vmem:[%s2] sm:$0xff]
    %27 = vset.pattern.permute.xlu0 0
    %28 = vperm.xlu0 %27, %v25
    %v29 = vpop.permute.xlu0 %28
    %v31 = vadd.f32 %v23, %v29
    %v32 = vadd.f32 %v24, %v29
    %33 = vst [vmem:[#allocation2] sm:$0xff] %v31
    %34 = vst [vmem:[#allocation2 + $0x8] sm:$0xff] %v32
    // Predicated region
    $region14: #{tpu_custom_call.1} parent=1 // pred_check
      _
    $region15: #{tpu_custom_call.1} parent=1 // pred_check_branch
      %36 = sbr.rel (0) target = $region17
    $region16: #{tpu_custom_call.1} parent=1 // pred_region
      %38 = vsyncadd [#allocation3], 0
      %s40 = sshll.u32 [#allocation2], 4
      %s41 = int_to_ptr.vmem [resolvable:$true] %s40
      %s42 = sshll.u32 %s3, 4
      %s43 = int_to_ptr.hbm [resolvable:$true] %s42
      %45 = dma.vmem_to_hbm [thread:$0]  %s41, 256, %s43, [#allocation3]
    $region17: #{tpu_custom_call.1} parent=1 // pred_fallthru
      _
    // Predicated region
    $region18: #{tpu_custom_call.1} parent=1 // pred_check
      _
    $region19: #{tpu_custom_call.1} parent=1 // pred_check_branch
      %47 = sbr.rel (0) target = $region21
    $region20: #{tpu_custom_call.1} parent=1 // pred_region
      %49 = dma.done [#allocation3], 256
    $region21: #{tpu_custom_call.1} parent=1 // pred_fallthru
      _
    %50 = vsyncpa [#allocation3], 1

</llo_original>
